<compile_context>
chip_gen: v7x
topology: tpu7x:2x2x1
jax: 0.10.0
libtpu: 0.0.40
codegen_flags: <defaults>
</compile_context>

<pallas_src>
import math

import jax
import jax.numpy as jnp
from jax.experimental import pallas as pl
from jax.experimental.pallas import tpu as pltpu


def _make_mlp_kernel(num_linear):
    """Fused feature-major MLP kernel: activations are (features, tile_n)."""

    def kernel(*refs):
        zt_ref = refs[0]                          # (in_dim, tile_n)  bf16
        wb_refs = refs[1:1 + 2 * num_linear]      # per layer: W (out,in) bf16, b (out,1) f32
        o_ref = refs[1 + 2 * num_linear]          # (3, tile_n)       f32

        h = zt_ref[...]
        for li in range(num_linear):
            w = wb_refs[2 * li][...]              # (out, in)  bf16  (nn.Linear layout)
            b = wb_refs[2 * li + 1][...]          # (out, 1)   f32
            # Contraction over `in`; rows stay on lanes; f32 accumulation on MXU.
            h = jnp.dot(w, h, preferred_element_type=jnp.float32) + b
            if li < num_linear - 1:
                # ReLU in f32 (v5e-safe), re-narrow to bf16 for the next MXU op.
                h = jnp.maximum(h, 0.0).astype(jnp.bfloat16)
        o_ref[...] = h.astype(o_ref.dtype)

    return kernel


def decoder_forward(z, params, *, tile_n=1024):
    """Pallas implementation of Decoder.forward (== SynthesisTransform.forward).

    z:      (N, in_dim) float32, in_dim = L + out_dim
    params: list of (W, b) with W: (out_features, in_features) [nn.Linear layout],
            b: (out_features, 1)
    """
    N, in_dim = z.shape
    num_linear = len(params)
    final_dim = params[-1][0].shape[0]            # 3

    tile_n = max(128, (int(tile_n) // 128) * 128)
    n_pad = pl.cdiv(N, tile_n) * tile_n
    grid_len = n_pad // tile_n

    # Feature-major, bf16, padded along the row (lane) axis.
    z_t = jnp.transpose(z).astype(jnp.bfloat16)   # (in_dim, N)
    if n_pad != N:
        z_t = jnp.pad(z_t, ((0, 0), (0, n_pad - N)))

    in_specs = [pl.BlockSpec((in_dim, tile_n), lambda i: (0, i))]
    flat_args = [z_t]
    flops = 0
    bytes_accessed = int(z_t.size) * 2 + n_pad * final_dim * 4
    for (w, b) in params:
        # Weights/biases: whole array resident every grid step (constant index map).
        in_specs.append(pl.BlockSpec(w.shape, lambda i: (0, 0)))
        in_specs.append(pl.BlockSpec(b.shape, lambda i: (0, 0)))
        flat_args += [w.astype(jnp.bfloat16), b.astype(jnp.float32)]
        flops += 2 * n_pad * w.shape[0] * w.shape[1]
        bytes_accessed += int(w.size) * 2 + int(b.size) * 4

    out_t = pl.pallas_call(
        _make_mlp_kernel(num_linear),
        out_shape=jax.ShapeDtypeStruct((final_dim, n_pad), jnp.float32),
        grid_spec=pltpu.PrefetchScalarGridSpec(
            num_scalar_prefetch=0,
            grid=(grid_len,),
            in_specs=in_specs,
            out_specs=pl.BlockSpec((final_dim, tile_n), lambda i: (0, i)),
        ),
        compiler_params=pltpu.CompilerParams(
            dimension_semantics=("parallel",),
            vmem_limit_bytes=48 * 1024 * 1024,     # safe on v5e/v6e/v7x
        ),
        cost_estimate=pl.CostEstimate(
            flops=flops, transcendentals=0, bytes_accessed=bytes_accessed),
    )(*flat_args)

    # Back to the PyTorch-facing layout (N, 3); drop padded rows.
    return jnp.transpose(out_t)[:N]


def init_mlp_params(key, in_dim, dim_hidden, num_layers):
    """Deterministic init matching SynthesisTransform(L=in_dim, ...) layer shapes.

    num_layers linears total: in_dim -> hidden -> ... -> hidden -> 3
    Weights in nn.Linear layout (out_features, in_features); biases (out, 1).
    """
    dims = [in_dim] + [dim_hidden] * max(num_layers - 1, 1) + [3]
    params = []
    for i in range(len(dims) - 1):
        key, kw, kb = jax.random.split(key, 3)
        bound = 1.0 / math.sqrt(dims[i])          # torch Linear default init scale
        w = jax.random.uniform(kw, (dims[i + 1], dims[i]), jnp.float32,
                               minval=-bound, maxval=bound)
        b = jax.random.uniform(kb, (dims[i + 1], 1), jnp.float32,
                               minval=-bound, maxval=bound)
        params.append((w, b))
    return params


def reference_forward_f32(z, params):
    h = z
    n = len(params)
    for i, (w, b) in enumerate(params):
        h = h @ w.T + b[:, 0]
        if i < n - 1:
            h = jnp.maximum(h, 0.0)
    return h


def reference_forward_bf16(z, params):
    """Same bf16-in / f32-accumulate recipe as the kernel, for a tight check."""
    h = z.astype(jnp.bfloat16)
    n = len(params)
    for i, (w, b) in enumerate(params):
        h = jnp.dot(h, w.astype(jnp.bfloat16).T,
                    preferred_element_type=jnp.float32) + b[:, 0]
        if i < n - 1:
            h = jnp.maximum(h, 0.0).astype(jnp.bfloat16)
    return h


if __name__ == "__main__":
    # Config consistent with Decoder(args, device, out_dim):
    #   args.L = 8, out_dim = 24 -> MLP input dim = 32
    #   args.dim_hidden = 32, args.num_layers = 3
    L = 8
    out_dim = 24
    dim_hidden = 32
    num_layers = 3
    in_dim = L + out_dim

    key = jax.random.PRNGKey(0)
    key, kz = jax.random.split(key)

    N = 4096                      # rows ("pixels"); tile_n=512 -> grid of 8
    z = jax.random.normal(kz, (N, in_dim), jnp.float32)
    params = init_mlp_params(key, in_dim, dim_hidden, num_layers)

    out = jax.block_until_ready(decoder_forward(z, params, tile_n=512))
    assert out.shape == (N, 3)

    ref_bf16 = reference_forward_bf16(z, params)
    ref_f32 = reference_forward_f32(z, params)
    assert jnp.allclose(out, ref_bf16, atol=5e-3, rtol=5e-3), "mismatch vs bf16 reference"
    assert jnp.allclose(out, ref_f32, atol=5e-2, rtol=5e-2), "mismatch vs f32 reference"

    # Ragged row count: exercises cdiv grid + wrapper-side padding.
    key, kz2 = jax.random.split(key)
    N2 = 1000
    z2 = jax.random.normal(kz2, (N2, in_dim), jnp.float32)
    out2 = jax.block_until_ready(decoder_forward(z2, params, tile_n=512))
    assert out2.shape == (N2, 3)
    assert jnp.allclose(out2, reference_forward_bf16(z2, params),
                        atol=5e-3, rtol=5e-3), "ragged-N mismatch"

    print("KERNEL_OK")
</pallas_src>

<mosaic_0001>
module attributes {stable_mosaic.version = 11 : i64} {
  func.func @kernel(%arg0: i32, %arg1: memref<32x512xbf16, #tpu.memory_space<vmem>>, %arg2: memref<32x32xbf16, #tpu.memory_space<vmem>>, %arg3: memref<32x1xf32, #tpu.memory_space<vmem>>, %arg4: memref<32x32xbf16, #tpu.memory_space<vmem>>, %arg5: memref<32x1xf32, #tpu.memory_space<vmem>>, %arg6: memref<3x32xbf16, #tpu.memory_space<vmem>>, %arg7: memref<3x1xf32, #tpu.memory_space<vmem>>, %arg8: memref<3x512xf32, #tpu.memory_space<vmem>>) attributes {dimension_semantics = [#tpu.dimension_semantics<parallel>], iteration_bounds = array<i64: 8>, scalar_prefetch = 0 : i64, scratch_operands = 0 : i64, tpu.core_type = #tpu.core_type<tc>, window_params = [{transform_indices = @transform_0, window_bounds = array<i64: 32, 512>}, {pipeline_mode = #tpu.pipeline_mode<synchronous>, transform_indices = @transform_1, window_bounds = array<i64: 32, 32>}, {pipeline_mode = #tpu.pipeline_mode<synchronous>, transform_indices = @transform_2, window_bounds = array<i64: 32, 1>}, {pipeline_mode = #tpu.pipeline_mode<synchronous>, transform_indices = @transform_3, window_bounds = array<i64: 32, 32>}, {pipeline_mode = #tpu.pipeline_mode<synchronous>, transform_indices = @transform_4, window_bounds = array<i64: 32, 1>}, {pipeline_mode = #tpu.pipeline_mode<synchronous>, transform_indices = @transform_5, window_bounds = array<i64: 3, 32>}, {pipeline_mode = #tpu.pipeline_mode<synchronous>, transform_indices = @transform_6, window_bounds = array<i64: 3, 1>}, {transform_indices = @transform_7, window_bounds = array<i64: 3, 512>}]} {
    %c0 = arith.constant 0 : index
    %c0_0 = arith.constant 0 : index
    %0 = vector.load %arg1[%c0, %c0_0] : memref<32x512xbf16, #tpu.memory_space<vmem>>, vector<32x512xbf16>
    %c0_1 = arith.constant 0 : index
    %c0_2 = arith.constant 0 : index
    %1 = vector.load %arg2[%c0_1, %c0_2] : memref<32x32xbf16, #tpu.memory_space<vmem>>, vector<32x32xbf16>
    %c0_3 = arith.constant 0 : index
    %c0_4 = arith.constant 0 : index
    %2 = vector.load %arg3[%c0_3, %c0_4] : memref<32x1xf32, #tpu.memory_space<vmem>>, vector<32x1xf32>
    %cst = arith.constant dense<0.000000e+00> : vector<32x512xf32>
    %3 = tpu.matmul %1, %0, %cst {dimension_numbers = #tpu.dot_dimension_numbers<[1], [0], [0], [1], [0, 0, 1, 1], [], []>} : vector<32x32xbf16>, vector<32x512xbf16>, vector<32x512xf32> -> vector<32x512xf32>
    %4 = vector.broadcast %2 : vector<32x1xf32> to vector<32x512xf32>
    %5 = arith.addf %3, %4 : vector<32x512xf32>
    %cst_5 = arith.constant 0.000000e+00 : f32
    %6 = vector.broadcast %cst_5 : f32 to vector<32x512xf32>
    %7 = arith.maximumf %5, %6 : vector<32x512xf32>
    %8 = arith.truncf %7 : vector<32x512xf32> to vector<32x512xbf16>
    %c0_6 = arith.constant 0 : index
    %c0_7 = arith.constant 0 : index
    %9 = vector.load %arg4[%c0_6, %c0_7] : memref<32x32xbf16, #tpu.memory_space<vmem>>, vector<32x32xbf16>
    %c0_8 = arith.constant 0 : index
    %c0_9 = arith.constant 0 : index
    %10 = vector.load %arg5[%c0_8, %c0_9] : memref<32x1xf32, #tpu.memory_space<vmem>>, vector<32x1xf32>
    %cst_10 = arith.constant dense<0.000000e+00> : vector<32x512xf32>
    %11 = tpu.matmul %9, %8, %cst_10 {dimension_numbers = #tpu.dot_dimension_numbers<[1], [0], [0], [1], [0, 0, 1, 1], [], []>} : vector<32x32xbf16>, vector<32x512xbf16>, vector<32x512xf32> -> vector<32x512xf32>
    %12 = vector.broadcast %10 : vector<32x1xf32> to vector<32x512xf32>
    %13 = arith.addf %11, %12 : vector<32x512xf32>
    %cst_11 = arith.constant 0.000000e+00 : f32
    %14 = vector.broadcast %cst_11 : f32 to vector<32x512xf32>
    %15 = arith.maximumf %13, %14 : vector<32x512xf32>
    %16 = arith.truncf %15 : vector<32x512xf32> to vector<32x512xbf16>
    %c0_12 = arith.constant 0 : index
    %c0_13 = arith.constant 0 : index
    %17 = vector.load %arg6[%c0_12, %c0_13] : memref<3x32xbf16, #tpu.memory_space<vmem>>, vector<3x32xbf16>
    %c0_14 = arith.constant 0 : index
    %c0_15 = arith.constant 0 : index
    %18 = vector.load %arg7[%c0_14, %c0_15] : memref<3x1xf32, #tpu.memory_space<vmem>>, vector<3x1xf32>
    %cst_16 = arith.constant dense<0.000000e+00> : vector<3x512xf32>
    %19 = tpu.matmul %17, %16, %cst_16 {dimension_numbers = #tpu.dot_dimension_numbers<[1], [0], [0], [1], [0, 0, 1, 1], [], []>} : vector<3x32xbf16>, vector<32x512xbf16>, vector<3x512xf32> -> vector<3x512xf32>
    %20 = vector.broadcast %18 : vector<3x1xf32> to vector<3x512xf32>
    %21 = arith.addf %19, %20 : vector<3x512xf32>
    %c0_17 = arith.constant 0 : index
    %c0_18 = arith.constant 0 : index
    %22 = vector.load %arg8[%c0_17, %c0_18] : memref<3x512xf32, #tpu.memory_space<vmem>>, vector<3x512xf32>
    tpu.vector_store %arg8[%c0_17, %c0_18], %21 {strides = array<i32>} : memref<3x512xf32, #tpu.memory_space<vmem>>, vector<3x512xf32>,
    return
  }
  func.func @transform_0(%arg0: i32) -> (i32, i32) {
    %c0_i32 = arith.constant 0 : i32
    %c0_i32_0 = arith.constant 0 : i32
    return %c0_i32, %arg0 : i32, i32
  }
  func.func @transform_1(%arg0: i32) -> (i32, i32) {
    %c0_i32 = arith.constant 0 : i32
    %c0_i32_0 = arith.constant 0 : i32
    %c0_i32_1 = arith.constant 0 : i32
    return %c0_i32, %c0_i32_0 : i32, i32
  }
  func.func @transform_2(%arg0: i32) -> (i32, i32) {
    %c0_i32 = arith.constant 0 : i32
    %c0_i32_0 = arith.constant 0 : i32
    %c0_i32_1 = arith.constant 0 : i32
    return %c0_i32, %c0_i32_0 : i32, i32
  }
  func.func @transform_3(%arg0: i32) -> (i32, i32) {
    %c0_i32 = arith.constant 0 : i32
    %c0_i32_0 = arith.constant 0 : i32
    %c0_i32_1 = arith.constant 0 : i32
    return %c0_i32, %c0_i32_0 : i32, i32
  }
  func.func @transform_4(%arg0: i32) -> (i32, i32) {
    %c0_i32 = arith.constant 0 : i32
    %c0_i32_0 = arith.constant 0 : i32
    %c0_i32_1 = arith.constant 0 : i32
    return %c0_i32, %c0_i32_0 : i32, i32
  }
  func.func @transform_5(%arg0: i32) -> (i32, i32) {
    %c0_i32 = arith.constant 0 : i32
    %c0_i32_0 = arith.constant 0 : i32
    %c0_i32_1 = arith.constant 0 : i32
    return %c0_i32, %c0_i32_0 : i32, i32
  }
  func.func @transform_6(%arg0: i32) -> (i32, i32) {
    %c0_i32 = arith.constant 0 : i32
    %c0_i32_0 = arith.constant 0 : i32
    %c0_i32_1 = arith.constant 0 : i32
    return %c0_i32, %c0_i32_0 : i32, i32
  }
  func.func @transform_7(%arg0: i32) -> (i32, i32) {
    %c0_i32 = arith.constant 0 : i32
    %c0_i32_0 = arith.constant 0 : i32
    return %c0_i32, %arg0 : i32, i32
  }
}

</mosaic_0001>

<llo_original>
// kernel: tpu_custom_call.1
$region0: #{tpu_custom_call.1}
  #allocation0 [shape = 'u32[]', space=smem, size = 0x4, offset = 0x4, fixed_abs, tag = 'smem constant byte address 0x4 - core index']
  #allocation1 [shape = 'u32[144,128]{1,0:T(1,128)}', space=vmem, size = 0x12000, scoped, tag = 'internal scratch']
  %s0 = inlined_call_operand.hbm [shape: bf16[32,4096], index: 0, kind: input, shape index: {}]
  %s1 = inlined_call_operand.vmem [shape: bf16[32,32], index: 1, kind: input, shape index: {}]
  %s2 = inlined_call_operand.vmem [shape: f32[32,1], index: 2, kind: input, shape index: {}]
  %s3 = inlined_call_operand.vmem [shape: bf16[32,32], index: 3, kind: input, shape index: {}]
  %s4 = inlined_call_operand.vmem [shape: f32[32,1], index: 4, kind: input, shape index: {}]
  %s5 = inlined_call_operand.vmem [shape: bf16[3,32], index: 5, kind: input, shape index: {}]
  %s6 = inlined_call_operand.vmem [shape: f32[3,1], index: 6, kind: input, shape index: {}]
  %s7 = inlined_call_operand.hbm [shape: f32[3,4096], index: 7, kind: output, shape index: {}]
  %s8 = sld [smem:[#allocation0]]
  $region65: #{tpu_custom_call.1} parent=0
    _
  %s10 = ssub.s32 1, %s8
  %s11 = scalar_select 0, %s10, %s8
  $region1: #{tpu_custom_call.1} parent=0
    #allocation2 [shape = 'u8[65536]{0}', space=vmem, size = 0x10000, scoped, tag = 'input window, operand 0']
    #allocation3 [shape = 's32[2]{0}', space=sflag, size = 0x8, scoped, tag = 'scoped memory for tpu_custom_call.1']
    #allocation4 [shape = 's32[2]{0}', space=sflag, size = 0x8, scoped, tag = 'scoped memory for tpu_custom_call.1']
    #allocation5 [shape = 'u8[16384]{0}', space=vmem, size = 0x4000, scoped, tag = 'output window, operand 0']
    %12 = vsyncpa [#allocation3], 0
    %s13 = scalar_lea.sflag [#allocation3], 1
    %14 = vsyncpa %s13, 0
    %15 = vsyncpa [#allocation4], 0
    %s16 = scalar_lea.sflag [#allocation4], 1
    %17 = vsyncpa %s16, 0
    loop: start=0, step=1, limit=10
    $region2: #{tpu_custom_call.1} parent=1 // loop_pre_header
      _
    $region3: #{tpu_custom_call.1} parent=1 // loop_header
      %s19 = sphi 0, %s23
      %p20 = scmp.ge.s32.totalorder %s19, 10
      %s29 = sphi 0, %s31
      %s32 = sphi 0, %s29
      %s33 = sphi 0, %s32
      %s49 = sphi 0, %s33
      %s53 = sphi 0, %s53
      %s55 = sphi 0, %s53
      %s56 = sphi 0, %s55
      %s70 = sphi 0, %s56
      %s74 = sphi 0, %s74
      %s76 = sphi 0, %s74
      %s77 = sphi 0, %s76
      %s91 = sphi 0, %s77
      %s95 = sphi 0, %s95
      %s97 = sphi 0, %s95
      %s98 = sphi 0, %s97
      %s112 = sphi 0, %s98
      %s116 = sphi 0, %s116
      %s118 = sphi 0, %s116
      %s119 = sphi 0, %s118
      %s133 = sphi 0, %s119
      %s137 = sphi 0, %s137
      %s139 = sphi 0, %s137
      %s140 = sphi 0, %s139
      %s154 = sphi 0, %s140
      %s158 = sphi 0, %s158
      %s160 = sphi 0, %s158
      %s161 = sphi 0, %s160
      %s175 = sphi 0, %s161
      %s181 = sphi 0, %s183
      %s184 = sphi 0, %s181
      %s185 = sphi 0, %s184
      %s201 = sphi 0, %s185
    $region4: #{tpu_custom_call.1} parent=1 // loop_header_branch
      %22 = sbr.rel (%p20) target = $region8
    $region5: #{tpu_custom_call.1} parent=1 // loop_body
      %s24 = ssub.s32 %s19, 1
      %s25 = ssub.s32 %s19, 2
      %s26 = sadd.s32 %s19, 1
      %s27 = ssub.s32 %s19, %s26
      %p28 = scmp.eq.s32.totalorder %s27, 0
      %s30 = sadd.s32 %s29, 1
      %s31 = scalar_select %p28, %s29, %s30
      %p34 = pneg %p28
      %p35 = scmp.eq.s32.totalorder %s19, 7
      %p36 = por %p34, %p35
      %p37 = scmp.ne.s32.totalorder %s29, %s32
      %p38 = scmp.eq.s32.totalorder %s19, 0
      %p39 = por %p37, %p38
      %p40 = scmp.ne.s32.totalorder %s29, %s32
      %p41 = scmp.eq.s32.totalorder %s24, 7
      %p42 = por %p40, %p41
      %p43 = scmp.ne.s32.totalorder %s32, %s33
      %p44 = scmp.eq.s32.totalorder %s24, 0
      %p45 = por %p43, %p44
      %p46 = scmp.ne.s32.totalorder %s32, %s33
      %p47 = scmp.eq.s32.totalorder %s25, 7
      %p48 = por %p46, %p47
      %p50 = scmp.ne.s32.totalorder %s33, %s49
      %p51 = scmp.eq.s32.totalorder %s25, 0
      %p52 = por %p50, %p51
      %s54 = sadd.s32 %s53, 1
      %p57 = scmp.eq.s32.totalorder %s19, 7
      %p58 = scmp.ne.s32.totalorder %s53, %s55
      %p59 = scmp.eq.s32.totalorder %s19, 0
      %p60 = por %p58, %p59
      %p61 = scmp.ne.s32.totalorder %s53, %s55
      %p62 = scmp.eq.s32.totalorder %s24, 7
      %p63 = por %p61, %p62
      %p64 = scmp.ne.s32.totalorder %s55, %s56
      %p65 = scmp.eq.s32.totalorder %s24, 0
      %p66 = por %p64, %p65
      %p67 = scmp.ne.s32.totalorder %s55, %s56
      %p68 = scmp.eq.s32.totalorder %s25, 7
      %p69 = por %p67, %p68
      %p71 = scmp.ne.s32.totalorder %s56, %s70
      %p72 = scmp.eq.s32.totalorder %s25, 0
      %p73 = por %p71, %p72
      %s75 = sadd.s32 %s74, 1
      %p78 = scmp.eq.s32.totalorder %s19, 7
      %p79 = scmp.ne.s32.totalorder %s74, %s76
      %p80 = scmp.eq.s32.totalorder %s19, 0
      %p81 = por %p79, %p80
      %p82 = scmp.ne.s32.totalorder %s74, %s76
      %p83 = scmp.eq.s32.totalorder %s24, 7
      %p84 = por %p82, %p83
      %p85 = scmp.ne.s32.totalorder %s76, %s77
      %p86 = scmp.eq.s32.totalorder %s24, 0
      %p87 = por %p85, %p86
      %p88 = scmp.ne.s32.totalorder %s76, %s77
      %p89 = scmp.eq.s32.totalorder %s25, 7
      %p90 = por %p88, %p89
      %p92 = scmp.ne.s32.totalorder %s77, %s91
      %p93 = scmp.eq.s32.totalorder %s25, 0
      %p94 = por %p92, %p93
      %s96 = sadd.s32 %s95, 1
      %p99 = scmp.eq.s32.totalorder %s19, 7
      %p100 = scmp.ne.s32.totalorder %s95, %s97
      %p101 = scmp.eq.s32.totalorder %s19, 0
      %p102 = por %p100, %p101
      %p103 = scmp.ne.s32.totalorder %s95, %s97
      %p104 = scmp.eq.s32.totalorder %s24, 7
      %p105 = por %p103, %p104
      %p106 = scmp.ne.s32.totalorder %s97, %s98
      %p107 = scmp.eq.s32.totalorder %s24, 0
      %p108 = por %p106, %p107
      %p109 = scmp.ne.s32.totalorder %s97, %s98
      %p110 = scmp.eq.s32.totalorder %s25, 7
      %p111 = por %p109, %p110
      %p113 = scmp.ne.s32.totalorder %s98, %s112
      %p114 = scmp.eq.s32.totalorder %s25, 0
      %p115 = por %p113, %p114
      %s117 = sadd.s32 %s116, 1
      %p120 = scmp.eq.s32.totalorder %s19, 7
      %p121 = scmp.ne.s32.totalorder %s116, %s118
      %p122 = scmp.eq.s32.totalorder %s19, 0
      %p123 = por %p121, %p122
      %p124 = scmp.ne.s32.totalorder %s116, %s118
      %p125 = scmp.eq.s32.totalorder %s24, 7
      %p126 = por %p124, %p125
      %p127 = scmp.ne.s32.totalorder %s118, %s119
      %p128 = scmp.eq.s32.totalorder %s24, 0
      %p129 = por %p127, %p128
      %p130 = scmp.ne.s32.totalorder %s118, %s119
      %p131 = scmp.eq.s32.totalorder %s25, 7
      %p132 = por %p130, %p131
      %p134 = scmp.ne.s32.totalorder %s119, %s133
      %p135 = scmp.eq.s32.totalorder %s25, 0
      %p136 = por %p134, %p135
      %s138 = sadd.s32 %s137, 1
      %p141 = scmp.eq.s32.totalorder %s19, 7
      %p142 = scmp.ne.s32.totalorder %s137, %s139
      %p143 = scmp.eq.s32.totalorder %s19, 0
      %p144 = por %p142, %p143
      %p145 = scmp.ne.s32.totalorder %s137, %s139
      %p146 = scmp.eq.s32.totalorder %s24, 7
      %p147 = por %p145, %p146
      %p148 = scmp.ne.s32.totalorder %s139, %s140
      %p149 = scmp.eq.s32.totalorder %s24, 0
      %p150 = por %p148, %p149
      %p151 = scmp.ne.s32.totalorder %s139, %s140
      %p152 = scmp.eq.s32.totalorder %s25, 7
      %p153 = por %p151, %p152
      %p155 = scmp.ne.s32.totalorder %s140, %s154
      %p156 = scmp.eq.s32.totalorder %s25, 0
      %p157 = por %p155, %p156
      %s159 = sadd.s32 %s158, 1
      %p162 = scmp.eq.s32.totalorder %s19, 7
      %p163 = scmp.ne.s32.totalorder %s158, %s160
      %p164 = scmp.eq.s32.totalorder %s19, 0
      %p165 = por %p163, %p164
      %p166 = scmp.ne.s32.totalorder %s158, %s160
      %p167 = scmp.eq.s32.totalorder %s24, 7
      %p168 = por %p166, %p167
      %p169 = scmp.ne.s32.totalorder %s160, %s161
      %p170 = scmp.eq.s32.totalorder %s24, 0
      %p171 = por %p169, %p170
      %p172 = scmp.ne.s32.totalorder %s160, %s161
      %p173 = scmp.eq.s32.totalorder %s25, 7
      %p174 = por %p172, %p173
      %p176 = scmp.ne.s32.totalorder %s161, %s175
      %p177 = scmp.eq.s32.totalorder %s25, 0
      %p178 = por %p176, %p177
      %s179 = ssub.s32 %s19, %s26
      %p180 = scmp.eq.s32.totalorder %s179, 0
      %s182 = sadd.s32 %s181, 1
      %s183 = scalar_select %p180, %s181, %s182
      %p186 = pneg %p180
      %p187 = scmp.eq.s32.totalorder %s19, 7
      %p188 = por %p186, %p187
      %p189 = scmp.ne.s32.totalorder %s181, %s184
      %p190 = scmp.eq.s32.totalorder %s19, 0
      %p191 = por %p189, %p190
      %p192 = scmp.ne.s32.totalorder %s181, %s184
      %p193 = scmp.eq.s32.totalorder %s24, 7
      %p194 = por %p192, %p193
      %p195 = scmp.ne.s32.totalorder %s184, %s185
      %p196 = scmp.eq.s32.totalorder %s24, 0
      %p197 = por %p195, %p196
      %p198 = scmp.ne.s32.totalorder %s184, %s185
      %p199 = scmp.eq.s32.totalorder %s25, 7
      %p200 = por %p198, %p199
      %p202 = scmp.ne.s32.totalorder %s185, %s201
      %p203 = scmp.eq.s32.totalorder %s25, 0
      %p204 = por %p202, %p203
      %p205 = scmp.le.s32.totalorder 1, %s19
      %p206 = scmp.lt.s32.totalorder %s19, 9
      %p207 = pnand %p205, %p206
      %p208 = pneg %p207
      // Predicated region
      $region9: #{tpu_custom_call.1} parent=5 // pred_check
        _
      $region10: #{tpu_custom_call.1} parent=5 // pred_check_branch
        %210 = sbr.rel (%p207) target = $region12
      $region11: #{tpu_custom_call.1} parent=5 // pred_region
        %s211 = ssub.s32 %s19, 1
        // Predicated region
        $region13: #{tpu_custom_call.1} parent=11 // pred_check
          %p212 = pneg %p66
        $region14: #{tpu_custom_call.1} parent=11 // pred_check_branch
          %214 = sbr.rel (%p212) target = $region16
        $region15: #{tpu_custom_call.1} parent=11 // pred_region
          _
        $region16: #{tpu_custom_call.1} parent=11 // pred_fallthru
          _
        // Predicated region
        $region17: #{tpu_custom_call.1} parent=11 // pred_check
          %p215 = pneg %p87
        $region18: #{tpu_custom_call.1} parent=11 // pred_check_branch
          %217 = sbr.rel (%p215) target = $region20
        $region19: #{tpu_custom_call.1} parent=11 // pred_region
          _
        $region20: #{tpu_custom_call.1} parent=11 // pred_fallthru
          _
        // Predicated region
        $region21: #{tpu_custom_call.1} parent=11 // pred_check
          %p218 = pneg %p108
        $region22: #{tpu_custom_call.1} parent=11 // pred_check_branch
          %220 = sbr.rel (%p218) target = $region24
        $region23: #{tpu_custom_call.1} parent=11 // pred_region
          _
        $region24: #{tpu_custom_call.1} parent=11 // pred_fallthru
          _
        // Predicated region
        $region25: #{tpu_custom_call.1} parent=11 // pred_check
          %p221 = pneg %p129
        $region26: #{tpu_custom_call.1} parent=11 // pred_check_branch
          %223 = sbr.rel (%p221) target = $region28
        $region27: #{tpu_custom_call.1} parent=11 // pred_region
          _
        $region28: #{tpu_custom_call.1} parent=11 // pred_fallthru
          _
        // Predicated region
        $region29: #{tpu_custom_call.1} parent=11 // pred_check
          %p224 = pneg %p150
        $region30: #{tpu_custom_call.1} parent=11 // pred_check_branch
          %226 = sbr.rel (%p224) target = $region32
        $region31: #{tpu_custom_call.1} parent=11 // pred_region
          _
        $region32: #{tpu_custom_call.1} parent=11 // pred_fallthru
          _
        // Predicated region
        $region33: #{tpu_custom_call.1} parent=11 // pred_check
          %p227 = pneg %p171
        $region34: #{tpu_custom_call.1} parent=11 // pred_check_branch
          %229 = sbr.rel (%p227) target = $region36
        $region35: #{tpu_custom_call.1} parent=11 // pred_region
          _
        $region36: #{tpu_custom_call.1} parent=11 // pred_fallthru
          _
      $region12: #{tpu_custom_call.1} parent=5 // pred_fallthru
        _
      %p230 = scmp.lt.s32.totalorder %s19, 8
      // Predicated region
      $region37: #{tpu_custom_call.1} parent=5 // pred_check
        %p231 = pneg %p230
      $region38: #{tpu_custom_call.1} parent=5 // pred_check_branch
        %233 = sbr.rel (%p231) target = $region40
      $region39: #{tpu_custom_call.1} parent=5 // pred_region
        // Predicated region
        $region41: #{tpu_custom_call.1} parent=39 // pred_check
          %p234 = pneg %p39
        $region42: #{tpu_custom_call.1} parent=39 // pred_check_branch
          %236 = sbr.rel (%p234) target = $region44
        $region43: #{tpu_custom_call.1} parent=39 // pred_region
          %s237 = sand.u32 %s29, 1
          %s238 = scalar_lea.sflag [#allocation3], %s237
          %s239 = sand.u32 %s29, 1
          %s240 = smul.addr %s239, 64
          %s241 = scalar_lea.vmem [#allocation2], %s240
          %s242 = smul.u32 4, %s19
          %s244 = ssub.s32 1024, 1024
          %245 = vsyncadd %s238, %s244
          %s246 = smul.addr %s242, 64
          %s247 = scalar_lea.hbm %s0, %s246
          %s248 = sshll.u32 %s241, 4
          %s249 = int_to_ptr.vmem [resolvable:$true] %s248
          %254 = dma.hbm_to_vmem [thread:$0]  %s247, 1024, %s249, %s238, 2048, 256, 16
        $region44: #{tpu_custom_call.1} parent=39 // pred_fallthru
          _
      $region40: #{tpu_custom_call.1} parent=5 // pred_fallthru
        _
      %p255 = scmp.le.s32.totalorder 1, %s19
      %p256 = scmp.lt.s32.totalorder %s19, 9
      %p257 = pnand %p255, %p256
      %p258 = pneg %p257
      // Predicated region
      $region45: #{tpu_custom_call.1} parent=5 // pred_check
        _
      $region46: #{tpu_custom_call.1} parent=5 // pred_check_branch
        %260 = sbr.rel (%p257) target = $region48
      $region47: #{tpu_custom_call.1} parent=5 // pred_region
        %s261 = ssub.s32 %s19, 1
        %s262 = sand.u32 %s32, 1
        %s263 = scalar_lea.sflag [#allocation3], %s262
        %s264 = sand.u32 %s32, 1
        %s265 = smul.addr %s264, 64
        %s266 = scalar_lea.vmem [#allocation2], %s265
        // Predicated region
        $region49: #{tpu_custom_call.1} parent=47 // pred_check
          %p267 = pneg %p45
        $region50: #{tpu_custom_call.1} parent=47 // pred_check_branch
          %269 = sbr.rel (%p267) target = $region52
        $region51: #{tpu_custom_call.1} parent=47 // pred_region
          %270 = dma.done %s263, 1024
        $region52: #{tpu_custom_call.1} parent=47 // pred_fallthru
          _
        %s271 = sand.u32 %s32, 1
        %s272 = scalar_lea.sflag [#allocation3], %s271
        %s273 = sand.u32 %s32, 1
        %s274 = smul.addr %s273, 64
        %s275 = scalar_lea.vmem [#allocation2], %s274
        %p276 = pneg %p45
        %p277 = pneg %p42
        %p278 = pneg %p66
        %p279 = pneg %p63
        %p280 = pneg %p87
        %p281 = pneg %p84
        %p282 = pneg %p108
        %p283 = pneg %p105
        %p284 = pneg %p129
        %p285 = pneg %p126
        %p286 = pneg %p150
        %p287 = pneg %p147
        %p288 = pneg %p171
        %p289 = pneg %p168
        %p290 = pneg %p197
        %p291 = pneg %p194
        %s292 = sand.u32 %s184, 1
        %s293 = scalar_lea.sflag [#allocation4], %s292
        %s294 = sand.u32 %s184, 1
        %s295 = smul.addr %s294, 16
        %s296 = scalar_lea.vmem [#allocation5], %s295
        %s297 = smul.u32 4, %s24
        %s298 = smul.u32 4, %s24
        %v300 = vld [vmem:[%s266] sm:$0xff]
        %v301 = vld [vmem:[%s266 + $0x8] sm:$0xff]
        %v302 = vld [vmem:[%s266 + $0x10] sm:$0xff]
        %v303 = vld [vmem:[%s266 + $0x18] sm:$0xff]
        %v304 = vld [vmem:[%s266 + $0x20] sm:$0xff]
        %v305 = vld [vmem:[%s266 + $0x28] sm:$0xff]
        %v306 = vld [vmem:[%s266 + $0x30] sm:$0xff]
        %v307 = vld [vmem:[%s266 + $0x38] sm:$0xff]
        %v308 = vld [vmem:[%s1] sm:$0xf]
        %v309 = vld [vmem:[%s1 + $0x4] sm:$0xf]
        %v310 = vld [vmem:[%s1 + $0x8] sm:$0xf]
        %v311 = vld [vmem:[%s1 + $0xc] sm:$0xf]
        %v312 = vld [vmem:[%s2] sm:$0xff]
        %v313 = vld [vmem:[%s2 + $0x8] sm:$0xff]
        %v314 = vld [vmem:[%s2 + $0x10] sm:$0xff]
        %v315 = vld [vmem:[%s2 + $0x18] sm:$0xff]
        %317 = vset.pattern.permute.xlu0 0
        %318 = vperm.xlu0 %317, %v312
        %v319 = vpop.permute.xlu0 %318
        %322 = vset.pattern.permute.xlu0 0
        %323 = vperm.xlu0 %322, %v313
        %v324 = vpop.permute.xlu0 %323
        %327 = vset.pattern.permute.xlu0 0
        %328 = vperm.xlu0 %327, %v314
        %v329 = vpop.permute.xlu0 %328
        %332 = vset.pattern.permute.xlu0 0
        %333 = vperm.xlu0 %332, %v315
        %v334 = vpop.permute.xlu0 %333
        %v340 = vunpack.c.l.b16 %v308
        %v341 = vunpack.c.l.b16 %v309
        %v342 = vunpack.c.l.b16 %v310
        %v343 = vunpack.c.l.b16 %v311
        %v344 = vpack.c.b16 %v341, %v340
        %v345 = vpack.c.b16 %v343, %v342
        %v354 = vunpack.c.l.b16 %v300
        %v355 = vunpack.c.h.b16 %v300
        %v356 = vunpack.c.l.b16 %v301
        %v357 = vunpack.c.h.b16 %v301
        %v358 = vunpack.c.l.b16 %v302
        %v359 = vunpack.c.h.b16 %v302
        %v360 = vunpack.c.l.b16 %v303
        %v361 = vunpack.c.h.b16 %v303
        %v362 = vunpack.c.l.b16 %v304
        %v363 = vunpack.c.h.b16 %v304
        %v364 = vunpack.c.l.b16 %v305
        %v365 = vunpack.c.h.b16 %v305
        %v366 = vunpack.c.l.b16 %v306
        %v367 = vunpack.c.h.b16 %v306
        %v368 = vunpack.c.l.b16 %v307
        %v369 = vunpack.c.h.b16 %v307
        %v370 = vpack.c.b16 %v358, %v354
        %v371 = vpack.c.b16 %v359, %v355
        %v372 = vpack.c.b16 %v360, %v356
        %v373 = vpack.c.b16 %v361, %v357
        %v374 = vpack.c.b16 %v366, %v362
        %v375 = vpack.c.b16 %v367, %v363
        %v376 = vpack.c.b16 %v368, %v364
        %v377 = vpack.c.b16 %v369, %v365
        %vm386 = vcmask 261120
        %v388 = vsel %vm386, %v344, 0
        %v391 = vsel %vm386, %v345, 0
        %393 = vmatprep.subr.bf16.mxu0 %v371
        %394 = vmatpush1.bf16.msra.mxu0 %v370
        %395 = vmatprep.subr.bf16.mxu0 %v375
        %396 = vmatpush1.bf16.msra.mxu0 %v374
        %397 = vmatprep.subr.bf16.mxu0 0
        %398 = vmatpush1.bf16.msra.mxu0 0
        %399 = vmatprep.subr.bf16.mxu0 0
        %400 = vmatpush1.bf16.msra.mxu0 0
        %401 = vmatprep.subr.bf16.mxu0 0
        %402 = vmatpush1.bf16.msra.mxu0 0
        %403 = vmatprep.subr.bf16.mxu0 0
        %404 = vmatpush1.bf16.msra.mxu0 0
        %405 = vmatprep.subr.bf16.mxu0 0
        %406 = vmatpush1.bf16.msra.mxu0 0
        %407 = vmatprep.subr.bf16.mxu0 0
        %408 = vmatpush1.bf16.msra.mxu0 0
        %409 = vmatprep.subr.bf16.mxu0 0
        %410 = vmatpush1.bf16.msra.mxu0 0
        %411 = vmatprep.subr.bf16.mxu0 0
        %412 = vmatpush1.bf16.msra.mxu0 0
        %413 = vmatprep.subr.bf16.mxu0 0
        %414 = vmatpush1.bf16.msra.mxu0 0
        %415 = vmatprep.subr.bf16.mxu0 0
        %416 = vmatpush1.bf16.msra.mxu0 0
        %417 = vmatprep.subr.bf16.mxu0 0
        %418 = vmatpush1.bf16.msra.mxu0 0
        %419 = vmatprep.subr.bf16.mxu0 0
        %420 = vmatpush1.bf16.msra.mxu0 0
        %421 = vmatprep.subr.bf16.mxu0 0
        %422 = vmatpush1.bf16.msra.mxu0 0
        %423 = vmatprep.subr.bf16.mxu0 0
        %424 = vmatpush1.bf16.msra.mxu0 0
        %425 = vmatprep.mubr.bf16.mxu0 0
        %426 = vmatmul.mubr.bf16.gmra.mrb[0].mxu0 %v388
        %v427 = vpop.f32.mrb[0].mxu0
        %v428 = vadd.f32 %v319, %v427
        %v429 = vpop.f32.mrb[0].mxu0
        %v430 = vadd.f32 %v319, %v429
        %v431 = vpop.f32.mrb[0].mxu0
        %v432 = vadd.f32 %v324, %v431
        %v433 = vpop.f32.mrb[0].mxu0
        %v434 = vadd.f32 %v324, %v433
        %435 = vmatprep.mubr.bf16.mxu0 0
        %436 = vmatmul.mubr.bf16.gmra.mrb[0].mxu0 %v391
        %v437 = vpop.f32.mrb[0].mxu0
        %v438 = vadd.f32 %v329, %v437
        %v439 = vpop.f32.mrb[0].mxu0
        %v440 = vadd.f32 %v329, %v439
        %v441 = vpop.f32.mrb[0].mxu0
        %v442 = vadd.f32 %v334, %v441
        %v443 = vpop.f32.mrb[0].mxu0
        %v444 = vadd.f32 %v334, %v443
        %445 = vdwg.mxu0
        %446 = vmatprep.subr.bf16.mxu0 %v373
        %447 = vmatpush1.bf16.msra.mxu0 %v372
        %448 = vmatprep.subr.bf16.mxu0 %v377
        %449 = vmatpush1.bf16.msra.mxu0 %v376
        %450 = vmatprep.subr.bf16.mxu0 0
        %451 = vmatpush1.bf16.msra.mxu0 0
        %452 = vmatprep.subr.bf16.mxu0 0
        %453 = vmatpush1.bf16.msra.mxu0 0
        %454 = vmatprep.subr.bf16.mxu0 0
        %455 = vmatpush1.bf16.msra.mxu0 0
        %456 = vmatprep.subr.bf16.mxu0 0
        %457 = vmatpush1.bf16.msra.mxu0 0
        %458 = vmatprep.subr.bf16.mxu0 0
        %459 = vmatpush1.bf16.msra.mxu0 0
        %460 = vmatprep.subr.bf16.mxu0 0
        %461 = vmatpush1.bf16.msra.mxu0 0
        %462 = vmatprep.subr.bf16.mxu0 0
        %463 = vmatpush1.bf16.msra.mxu0 0
        %464 = vmatprep.subr.bf16.mxu0 0
        %465 = vmatpush1.bf16.msra.mxu0 0
        %466 = vmatprep.subr.bf16.mxu0 0
        %467 = vmatpush1.bf16.msra.mxu0 0
        %468 = vmatprep.subr.bf16.mxu0 0
        %469 = vmatpush1.bf16.msra.mxu0 0
        %470 = vmatprep.subr.bf16.mxu0 0
        %471 = vmatpush1.bf16.msra.mxu0 0
        %472 = vmatprep.subr.bf16.mxu0 0
        %473 = vmatpush1.bf16.msra.mxu0 0
        %474 = vmatprep.subr.bf16.mxu0 0
        %475 = vmatpush1.bf16.msra.mxu0 0
        %476 = vmatprep.subr.bf16.mxu0 0
        %477 = vmatpush1.bf16.msra.mxu0 0
        %478 = vmatprep.mubr.bf16.mxu0 0
        %479 = vmatmul.mubr.bf16.gmra.mrb[0].mxu0 %v388
        %v480 = vpop.f32.mrb[0].mxu0
        %v481 = vadd.f32 %v319, %v480
        %v482 = vpop.f32.mrb[0].mxu0
        %v483 = vadd.f32 %v319, %v482
        %v484 = vpop.f32.mrb[0].mxu0
        %v485 = vadd.f32 %v324, %v484
        %v486 = vpop.f32.mrb[0].mxu0
        %v487 = vadd.f32 %v324, %v486
        %488 = vmatprep.mubr.bf16.mxu0 0
        %489 = vmatmul.mubr.bf16.gmra.mrb[0].mxu0 %v391
        %v490 = vpop.f32.mrb[0].mxu0
        %v491 = vadd.f32 %v329, %v490
        %v492 = vpop.f32.mrb[0].mxu0
        %v493 = vadd.f32 %v329, %v492
        %v494 = vpop.f32.mrb[0].mxu0
        %v495 = vadd.f32 %v334, %v494
        %v496 = vpop.f32.mrb[0].mxu0
        %v497 = vadd.f32 %v334, %v496
        %498 = vdwg.mxu0
        %v499 = vmax.f32 %v428, 0.0
        %v500 = vmax.f32 %v430, 0.0
        %v501 = vmax.f32 %v481, 0.0
        %v502 = vmax.f32 %v483, 0.0
        %v503 = vmax.f32 %v432, 0.0
        %v504 = vmax.f32 %v434, 0.0
        %v505 = vmax.f32 %v485, 0.0
        %v506 = vmax.f32 %v487, 0.0
        %v507 = vmax.f32 %v438, 0.0
        %v508 = vmax.f32 %v440, 0.0
        %v509 = vmax.f32 %v491, 0.0
        %v510 = vmax.f32 %v493, 0.0
        %v511 = vmax.f32 %v442, 0.0
        %v512 = vmax.f32 %v444, 0.0
        %v513 = vmax.f32 %v495, 0.0
        %v514 = vmax.f32 %v497, 0.0
        %v515 = vpack.c.bf16 %v503, %v499
        %v516 = vpack.c.bf16 %v504, %v500
        %v517 = vpack.c.bf16 %v505, %v501
        %v518 = vpack.c.bf16 %v506, %v502
        %v519 = vpack.c.bf16 %v511, %v507
        %v520 = vpack.c.bf16 %v512, %v508
        %v521 = vpack.c.bf16 %v513, %v509
        %v522 = vpack.c.bf16 %v514, %v510
        %v523 = vld [vmem:[%s3] sm:$0xf]
        %v524 = vld [vmem:[%s3 + $0x4] sm:$0xf]
        %v525 = vld [vmem:[%s3 + $0x8] sm:$0xf]
        %v526 = vld [vmem:[%s3 + $0xc] sm:$0xf]
        %v527 = vld [vmem:[%s4] sm:$0xff]
        %v528 = vld [vmem:[%s4 + $0x8] sm:$0xff]
        %v529 = vld [vmem:[%s4 + $0x10] sm:$0xff]
        %v530 = vld [vmem:[%s4 + $0x18] sm:$0xff]
        %532 = vset.pattern.permute.xlu0 0
        %533 = vperm.xlu0 %532, %v527
        %v534 = vpop.permute.xlu0 %533
        %537 = vset.pattern.permute.xlu0 0
        %538 = vperm.xlu0 %537, %v528
        %v539 = vpop.permute.xlu0 %538
        %542 = vset.pattern.permute.xlu0 0
        %543 = vperm.xlu0 %542, %v529
        %v544 = vpop.permute.xlu0 %543
        %547 = vset.pattern.permute.xlu0 0
        %548 = vperm.xlu0 %547, %v530
        %v549 = vpop.permute.xlu0 %548
        %v555 = vunpack.c.l.b16 %v523
        %v556 = vunpack.c.l.b16 %v524
        %v557 = vunpack.c.l.b16 %v525
        %v558 = vunpack.c.l.b16 %v526
        %v559 = vpack.c.b16 %v556, %v555
        %v560 = vpack.c.b16 %v558, %v557
        %v562 = vsel %vm386, %v559, 0
        %v565 = vsel %vm386, %v560, 0
        %567 = vmatprep.subr.bf16.mxu0 %v516
        %568 = vmatpush1.bf16.msra.mxu0 %v515
        %569 = vmatprep.subr.bf16.mxu0 %v520
        %570 = vmatpush1.bf16.msra.mxu0 %v519
        %571 = vmatprep.subr.bf16.mxu0 0
        %572 = vmatpush1.bf16.msra.mxu0 0
        %573 = vmatprep.subr.bf16.mxu0 0
        %574 = vmatpush1.bf16.msra.mxu0 0
        %575 = vmatprep.subr.bf16.mxu0 0
        %576 = vmatpush1.bf16.msra.mxu0 0
        %577 = vmatprep.subr.bf16.mxu0 0
        %578 = vmatpush1.bf16.msra.mxu0 0
        %579 = vmatprep.subr.bf16.mxu0 0
        %580 = vmatpush1.bf16.msra.mxu0 0
        %581 = vmatprep.subr.bf16.mxu0 0
        %582 = vmatpush1.bf16.msra.mxu0 0
        %583 = vmatprep.subr.bf16.mxu0 0
        %584 = vmatpush1.bf16.msra.mxu0 0
        %585 = vmatprep.subr.bf16.mxu0 0
        %586 = vmatpush1.bf16.msra.mxu0 0
        %587 = vmatprep.subr.bf16.mxu0 0
        %588 = vmatpush1.bf16.msra.mxu0 0
        %589 = vmatprep.subr.bf16.mxu0 0
        %590 = vmatpush1.bf16.msra.mxu0 0
        %591 = vmatprep.subr.bf16.mxu0 0
        %592 = vmatpush1.bf16.msra.mxu0 0
        %593 = vmatprep.subr.bf16.mxu0 0
        %594 = vmatpush1.bf16.msra.mxu0 0
        %595 = vmatprep.subr.bf16.mxu0 0
        %596 = vmatpush1.bf16.msra.mxu0 0
        %597 = vmatprep.subr.bf16.mxu0 0
        %598 = vmatpush1.bf16.msra.mxu0 0
        %599 = vmatprep.mubr.bf16.mxu0 0
        %600 = vmatmul.mubr.bf16.gmra.mrb[0].mxu0 %v562
        %v601 = vpop.f32.mrb[0].mxu0
        %v602 = vadd.f32 %v534, %v601
        %v603 = vpop.f32.mrb[0].mxu0
        %v604 = vadd.f32 %v534, %v603
        %v605 = vpop.f32.mrb[0].mxu0
        %v606 = vadd.f32 %v539, %v605
        %v607 = vpop.f32.mrb[0].mxu0
        %v608 = vadd.f32 %v539, %v607
        %609 = vmatprep.mubr.bf16.mxu0 0
        %610 = vmatmul.mubr.bf16.gmra.mrb[0].mxu0 %v565
        %v611 = vpop.f32.mrb[0].mxu0
        %v612 = vadd.f32 %v544, %v611
        %v613 = vpop.f32.mrb[0].mxu0
        %v614 = vadd.f32 %v544, %v613
        %v615 = vpop.f32.mrb[0].mxu0
        %v616 = vadd.f32 %v549, %v615
        %v617 = vpop.f32.mrb[0].mxu0
        %v618 = vadd.f32 %v549, %v617
        %619 = vdwg.mxu0
        %620 = vmatprep.subr.bf16.mxu0 %v518
        %621 = vmatpush1.bf16.msra.mxu0 %v517
        %622 = vmatprep.subr.bf16.mxu0 %v522
        %623 = vmatpush1.bf16.msra.mxu0 %v521
        %624 = vmatprep.subr.bf16.mxu0 0
        %625 = vmatpush1.bf16.msra.mxu0 0
        %626 = vmatprep.subr.bf16.mxu0 0
        %627 = vmatpush1.bf16.msra.mxu0 0
        %628 = vmatprep.subr.bf16.mxu0 0
        %629 = vmatpush1.bf16.msra.mxu0 0
        %630 = vmatprep.subr.bf16.mxu0 0
        %631 = vmatpush1.bf16.msra.mxu0 0
        %632 = vmatprep.subr.bf16.mxu0 0
        %633 = vmatpush1.bf16.msra.mxu0 0
        %634 = vmatprep.subr.bf16.mxu0 0
        %635 = vmatpush1.bf16.msra.mxu0 0
        %636 = vmatprep.subr.bf16.mxu0 0
        %637 = vmatpush1.bf16.msra.mxu0 0
        %638 = vmatprep.subr.bf16.mxu0 0
        %639 = vmatpush1.bf16.msra.mxu0 0
        %640 = vmatprep.subr.bf16.mxu0 0
        %641 = vmatpush1.bf16.msra.mxu0 0
        %642 = vmatprep.subr.bf16.mxu0 0
        %643 = vmatpush1.bf16.msra.mxu0 0
        %644 = vmatprep.subr.bf16.mxu0 0
        %645 = vmatpush1.bf16.msra.mxu0 0
        %646 = vmatprep.subr.bf16.mxu0 0
        %647 = vmatpush1.bf16.msra.mxu0 0
        %648 = vmatprep.subr.bf16.mxu0 0
        %649 = vmatpush1.bf16.msra.mxu0 0
        %650 = vmatprep.subr.bf16.mxu0 0
        %651 = vmatpush1.bf16.msra.mxu0 0
        %652 = vmatprep.mubr.bf16.mxu0 0
        %653 = vmatmul.mubr.bf16.gmra.mrb[0].mxu0 %v562
        %v654 = vpop.f32.mrb[0].mxu0
        %v655 = vadd.f32 %v534, %v654
        %v656 = vpop.f32.mrb[0].mxu0
        %v657 = vadd.f32 %v534, %v656
        %v658 = vpop.f32.mrb[0].mxu0
        %v659 = vadd.f32 %v539, %v658
        %v660 = vpop.f32.mrb[0].mxu0
        %v661 = vadd.f32 %v539, %v660
        %662 = vmatprep.mubr.bf16.mxu0 0
        %663 = vmatmul.mubr.bf16.gmra.mrb[0].mxu0 %v565
        %v664 = vpop.f32.mrb[0].mxu0
        %v665 = vadd.f32 %v544, %v664
        %v666 = vpop.f32.mrb[0].mxu0
        %v667 = vadd.f32 %v544, %v666
        %v668 = vpop.f32.mrb[0].mxu0
        %v669 = vadd.f32 %v549, %v668
        %v670 = vpop.f32.mrb[0].mxu0
        %v671 = vadd.f32 %v549, %v670
        %672 = vdwg.mxu0
        %v673 = vmax.f32 %v602, 0.0
        %v674 = vmax.f32 %v604, 0.0
        %v675 = vmax.f32 %v655, 0.0
        %v676 = vmax.f32 %v657, 0.0
        %v677 = vmax.f32 %v606, 0.0
        %v678 = vmax.f32 %v608, 0.0
        %v679 = vmax.f32 %v659, 0.0
        %v680 = vmax.f32 %v661, 0.0
        %v681 = vmax.f32 %v612, 0.0
        %v682 = vmax.f32 %v614, 0.0
        %v683 = vmax.f32 %v665, 0.0
        %v684 = vmax.f32 %v667, 0.0
        %v685 = vmax.f32 %v616, 0.0
        %v686 = vmax.f32 %v618, 0.0
        %v687 = vmax.f32 %v669, 0.0
        %v688 = vmax.f32 %v671, 0.0
        %v689 = vpack.c.bf16 %v677, %v673
        %v690 = vpack.c.bf16 %v678, %v674
        %v691 = vpack.c.bf16 %v679, %v675
        %v692 = vpack.c.bf16 %v680, %v676
        %v693 = vpack.c.bf16 %v685, %v681
        %v694 = vpack.c.bf16 %v686, %v682
        %v695 = vpack.c.bf16 %v687, %v683
        %v696 = vpack.c.bf16 %v688, %v684
        %v697 = vld [vmem:[%s5] sm:$0x3]
        %v698 = vld [vmem:[%s6] sm:$0x7]
        %700 = vset.pattern.permute.xlu0 0
        %701 = vperm.xlu0 %700, %v698
        %v702 = vpop.permute.xlu0 %701
        %v705 = vsel %vm386, %v697, 0
        %707 = vmatprep.subr.bf16.mxu0 %v690
        %708 = vmatpush1.bf16.msra.mxu0 %v689
        %709 = vmatprep.subr.bf16.mxu0 %v694
        %710 = vmatpush1.bf16.msra.mxu0 %v693
        %711 = vmatprep.subr.bf16.mxu0 0
        %712 = vmatpush1.bf16.msra.mxu0 0
        %713 = vmatprep.subr.bf16.mxu0 0
        %714 = vmatpush1.bf16.msra.mxu0 0
        %715 = vmatprep.subr.bf16.mxu0 0
        %716 = vmatpush1.bf16.msra.mxu0 0
        %717 = vmatprep.subr.bf16.mxu0 0
        %718 = vmatpush1.bf16.msra.mxu0 0
        %719 = vmatprep.subr.bf16.mxu0 0
        %720 = vmatpush1.bf16.msra.mxu0 0
        %721 = vmatprep.subr.bf16.mxu0 0
        %722 = vmatpush1.bf16.msra.mxu0 0
        %723 = vmatprep.subr.bf16.mxu0 0
        %724 = vmatpush1.bf16.msra.mxu0 0
        %725 = vmatprep.subr.bf16.mxu0 0
        %726 = vmatpush1.bf16.msra.mxu0 0
        %727 = vmatprep.subr.bf16.mxu0 0
        %728 = vmatpush1.bf16.msra.mxu0 0
        %729 = vmatprep.subr.bf16.mxu0 0
        %730 = vmatpush1.bf16.msra.mxu0 0
        %731 = vmatprep.subr.bf16.mxu0 0
        %732 = vmatpush1.bf16.msra.mxu0 0
        %733 = vmatprep.subr.bf16.mxu0 0
        %734 = vmatpush1.bf16.msra.mxu0 0
        %735 = vmatprep.subr.bf16.mxu0 0
        %736 = vmatpush1.bf16.msra.mxu0 0
        %737 = vmatprep.subr.bf16.mxu0 0
        %738 = vmatpush1.bf16.msra.mxu0 0
        %739 = vmatprep.mubr.bf16.mxu0 0
        %740 = vmatmul.mubr.bf16.gmra.mrb[0].mxu0 %v705
        %v741 = vpop.f32.mrb[0].mxu0
        %v742 = vadd.f32 %v702, %v741
        %v743 = vpop.f32.mrb[0].mxu0
        %v744 = vadd.f32 %v702, %v743
        %v745 = vpop.f32.mrb[0].mxu0
        %v746 = vpop.f32.mrb[0].mxu0
        %747 = vdwg.mxu0
        %748 = vmatprep.subr.bf16.mxu0 %v692
        %749 = vmatpush1.bf16.msra.mxu0 %v691
        %750 = vmatprep.subr.bf16.mxu0 %v696
        %751 = vmatpush1.bf16.msra.mxu0 %v695
        %752 = vmatprep.subr.bf16.mxu0 0
        %753 = vmatpush1.bf16.msra.mxu0 0
        %754 = vmatprep.subr.bf16.mxu0 0
        %755 = vmatpush1.bf16.msra.mxu0 0
        %756 = vmatprep.subr.bf16.mxu0 0
        %757 = vmatpush1.bf16.msra.mxu0 0
        %758 = vmatprep.subr.bf16.mxu0 0
        %759 = vmatpush1.bf16.msra.mxu0 0
        %760 = vmatprep.subr.bf16.mxu0 0
        %761 = vmatpush1.bf16.msra.mxu0 0
        %762 = vmatprep.subr.bf16.mxu0 0
        %763 = vmatpush1.bf16.msra.mxu0 0
        %764 = vmatprep.subr.bf16.mxu0 0
        %765 = vmatpush1.bf16.msra.mxu0 0
        %766 = vmatprep.subr.bf16.mxu0 0
        %767 = vmatpush1.bf16.msra.mxu0 0
        %768 = vmatprep.subr.bf16.mxu0 0
        %769 = vmatpush1.bf16.msra.mxu0 0
        %770 = vmatprep.subr.bf16.mxu0 0
        %771 = vmatpush1.bf16.msra.mxu0 0
        %772 = vmatprep.subr.bf16.mxu0 0
        %773 = vmatpush1.bf16.msra.mxu0 0
        %774 = vmatprep.subr.bf16.mxu0 0
        %775 = vmatpush1.bf16.msra.mxu0 0
        %776 = vmatprep.subr.bf16.mxu0 0
        %777 = vmatpush1.bf16.msra.mxu0 0
        %778 = vmatprep.subr.bf16.mxu0 0
        %779 = vmatpush1.bf16.msra.mxu0 0
        %780 = vmatprep.mubr.bf16.mxu0 0
        %781 = vmatmul.mubr.bf16.gmra.mrb[0].mxu0 %v705
        %v782 = vpop.f32.mrb[0].mxu0
        %v783 = vadd.f32 %v702, %v782
        %v784 = vpop.f32.mrb[0].mxu0
        %v785 = vadd.f32 %v702, %v784
        %v786 = vpop.f32.mrb[0].mxu0
        %v787 = vpop.f32.mrb[0].mxu0
        %788 = vdwg.mxu0
        %v793 = vcombine.low %v742, %v744
        %v794 = vcombine.low %v783, %v785
        %797 = vst [vmem:[%s296] sm:$0x77] %v793
        %798 = vst [vmem:[%s296 + $0x8] sm:$0x77] %v794
        %s799 = sand.u32 %s184, 1
        %s800 = scalar_lea.sflag [#allocation4], %s799
        %s801 = sand.u32 %s184, 1
        %s802 = smul.addr %s801, 16
        %s803 = scalar_lea.vmem [#allocation5], %s802
        // Predicated region
        $region53: #{tpu_custom_call.1} parent=47 // pred_check
          %p804 = pneg %p194
        $region54: #{tpu_custom_call.1} parent=47 // pred_check_branch
          %806 = sbr.rel (%p804) target = $region56
        $region55: #{tpu_custom_call.1} parent=47 // pred_region
          %s807 = smul.u32 4, %s24
          %s809 = ssub.s32 256, 256
          %810 = vsyncadd %s800, %s809
          %s811 = smul.addr %s807, 64
          %s812 = scalar_lea.hbm %s7, %s811
          %s814 = sshll.u32 %s803, 4
          %s815 = int_to_ptr.vmem [resolvable:$true] %s814
          %817 = dma.vmem_to_hbm [thread:$0]  %s815, 256, %s812, %s800
        $region56: #{tpu_custom_call.1} parent=47 // pred_fallthru
          _
      $region48: #{tpu_custom_call.1} parent=5 // pred_fallthru
        _
      %p818 = scmp.le.s32.totalorder 2, %s19
      // Predicated region
      $region57: #{tpu_custom_call.1} parent=5 // pred_check
        %p819 = pneg %p818
      $region58: #{tpu_custom_call.1} parent=5 // pred_check_branch
        %821 = sbr.rel (%p819) target = $region60
      $region59: #{tpu_custom_call.1} parent=5 // pred_region
        %s822 = ssub.s32 %s19, 2
        // Predicated region
        $region61: #{tpu_custom_call.1} parent=59 // pred_check
          %p823 = pneg %p200
        $region62: #{tpu_custom_call.1} parent=59 // pred_check_branch
          %825 = sbr.rel (%p823) target = $region64
        $region63: #{tpu_custom_call.1} parent=59 // pred_region
          %s826 = sand.u32 %s185, 1
          %s827 = scalar_lea.sflag [#allocation4], %s826
          %s828 = sand.u32 %s185, 1
          %s829 = smul.addr %s828, 16
          %s830 = scalar_lea.vmem [#allocation5], %s829
          %831 = dma.done %s827, 256
        $region64: #{tpu_custom_call.1} parent=59 // pred_fallthru
          _
      $region60: #{tpu_custom_call.1} parent=5 // pred_fallthru
        _
    $region6: #{tpu_custom_call.1} parent=1 // loop_footer
      %s23 = sadd.s32 1, %s19
    $region7: #{tpu_custom_call.1} parent=1 // loop_footer_branch
      %18 = sbr.rel target = $region3
    $region8: #{tpu_custom_call.1} parent=1 // loop_exit
      _
    %832 = vsyncpa [#allocation3], 1
    %s833 = scalar_lea.sflag [#allocation3], 1
    %834 = vsyncpa %s833, 1
    %835 = vsyncpa [#allocation4], 1
    %s836 = scalar_lea.sflag [#allocation4], 1
    %837 = vsyncpa %s836, 1

</llo_original>
